<compile_context>
chip_gen: v7x
topology: tpu7x:2x2x1
jax: 0.10.0
libtpu: 0.0.40
codegen_flags: <defaults>
</compile_context>

<pallas_src>
import functools
import math

import jax
import jax.numpy as jnp
from jax.experimental import pallas as pl
from jax.experimental.pallas import tpu as pltpu


# ---------------------------------------------------------------------------
# Positional-encoding table (matches PyTorch: pe[:, 0::2]=sin, pe[:, 1::2]=cos)
# ---------------------------------------------------------------------------
def _build_pe(max_len: int, d_model: int) -> jnp.ndarray:
    assert d_model % 2 == 0, "sinusoidal PE interleave requires even d_model"
    position = jnp.arange(0, max_len, dtype=jnp.float32)[:, None]            # (L, 1)
    div_term = jnp.exp(jnp.arange(0, d_model, 2, dtype=jnp.float32)
                       * (-math.log(10000.0) / d_model))                     # (D/2,)
    sin_part = jnp.sin(position * div_term)                                  # (L, D/2)
    cos_part = jnp.cos(position * div_term)                                  # (L, D/2)
    pe = jnp.stack([sin_part, cos_part], axis=-1).reshape(max_len, d_model)
    return pe.astype(jnp.float32)


# ---------------------------------------------------------------------------
# Kernels
# ---------------------------------------------------------------------------
def _pe_add_kernel(x_ref, pe_ref, o_ref):
    # x_ref/o_ref: (ts, tb, D); pe_ref: (ts, D).  Single vld + vadd + vst per
    # vreg — no extra layout shuffles on the store path.
    o_ref[...] = x_ref[...] + pe_ref[...][:, None, :]


def _pe_add_folded_kernel(x_ref, pe_ref, o_ref, *, batch: int, d_model: int):
    # Lane-dense path: x/o blocks are (ts, batch*d_model), so stores are
    # unmasked full-lane vst.  pe block is (ts, d_model); the batch broadcast
    # uses static, 128-aligned ref slices (d_model % 128 == 0 on this path).
    pe_blk = pe_ref[...]                       # hoisted out of the batch loop
    for b in range(batch):                     # static unroll; batch < 8 here
        sl = slice(b * d_model, (b + 1) * d_model)
        o_ref[:, sl] = x_ref[:, sl] + pe_blk


# ---------------------------------------------------------------------------
# Tiling heuristics
# ---------------------------------------------------------------------------
# Budget double-buffered blocks for the smallest-VMEM generation (v7x: 64 MiB
# physical, 32 MiB scoped default); v5e/v6e have 128 MiB so this is always safe.
_VMEM_TILE_BUDGET_BYTES = 24 * 1024 * 1024
_VMEM_LIMIT_BYTES = 48 * 1024 * 1024


def _choose_seq_tile(seq_len: int, per_row_bytes: int) -> int:
    """Largest multiple-of-8 sequence tile fitting the VMEM budget, preferring
    >= 2 grid steps so the DMA pipeline (and, on v7x, both TensorCores) have
    independent work to overlap."""
    max_rows = (_VMEM_TILE_BUDGET_BYTES // max(per_row_bytes, 1)) // 8 * 8
    max_rows = max(max_rows, 8)
    ts = min(max(seq_len, 8), max_rows)
    if ts >= seq_len and seq_len >= 16:
        ts = (seq_len + 1) // 2
    ts = max(8, ts - ts % 8)
    return ts


# ---------------------------------------------------------------------------
# Forward pass
# ---------------------------------------------------------------------------
def positional_encoding_forward(x: jnp.ndarray, pe: jnp.ndarray) -> jnp.ndarray:
    """PositionalEncoding forward (eval mode: dropout == identity).

    x:  (S, B, D)       any float dtype (bf16 halves HBM bytes moved)
    pe: (max_len, D)    full table; sliced block-wise by the index_map
    """
    S, B, D = x.shape
    max_len, d_pe = pe.shape
    assert d_pe == D and max_len >= S
    pe = pe.astype(x.dtype)
    itemsize = jnp.dtype(x.dtype).itemsize

    # NOTE: for tiny tensors (like the demo below) the fixed pallas_call cost
    # dominates and a fused XLA add is faster; in a real model this add should
    # be fused into the adjacent embedding-scale / projection kernel.

    if D % 128 == 0 and B < 8:
        # ---- Lane-dense path: fold batch into lanes -> (S, B*D) blocks ----
        x2 = x.reshape(S, B * D)                                  # free (row-major)
        per_row = (4 * B * D + 2 * D) * itemsize                  # dbl-buffered x+out, pe
        ts = _choose_seq_tile(S, per_row)
        grid = (pl.cdiv(S, ts),)
        kern = functools.partial(_pe_add_folded_kernel, batch=B, d_model=D)
        out = pl.pallas_call(
            kern,
            out_shape=jax.ShapeDtypeStruct((S, B * D), x.dtype),
            grid_spec=pltpu.PrefetchScalarGridSpec(
                num_scalar_prefetch=0,
                grid=grid,
                in_specs=[pl.BlockSpec((ts, B * D), lambda i: (i, 0)),
                          pl.BlockSpec((ts, D), lambda i: (i, 0))],
                out_specs=pl.BlockSpec((ts, B * D), lambda i: (i, 0)),
            ),
            input_output_aliases={0: 0},                          # write in place
            compiler_params=pltpu.CompilerParams(
                dimension_semantics=("parallel",),
                vmem_limit_bytes=_VMEM_LIMIT_BYTES),
        )(x2, pe)
        return out.reshape(S, B, D)

    # ---- General path: (ts, tb, D) blocks; batch is the inner grid axis so
    # the pe block index is constant across consecutive steps (pe DMA elided).
    tb = 8 if (B > 8 and B % 8 == 0) else B
    per_row = (4 * tb * D + 2 * D) * itemsize
    ts = _choose_seq_tile(S, per_row)
    grid = (pl.cdiv(S, ts), pl.cdiv(B, tb))
    out = pl.pallas_call(
        _pe_add_kernel,
        out_shape=jax.ShapeDtypeStruct((S, B, D), x.dtype),
        grid_spec=pltpu.PrefetchScalarGridSpec(
            num_scalar_prefetch=0,
            grid=grid,
            in_specs=[pl.BlockSpec((ts, tb, D), lambda i, j: (i, j, 0)),
                      pl.BlockSpec((ts, D), lambda i, j: (i, 0))],
            out_specs=pl.BlockSpec((ts, tb, D), lambda i, j: (i, j, 0)),
        ),
        input_output_aliases={0: 0},                              # write in place
        compiler_params=pltpu.CompilerParams(
            dimension_semantics=("parallel", "arbitrary"),
            vmem_limit_bytes=_VMEM_LIMIT_BYTES),
    )(x, pe)
    # TODO(synk): nn.Dropout(p=0.1) is identity in eval mode; a training-mode
    # dropout mask (which would not match PyTorch's RNG anyway) is not applied.
    return out


if __name__ == "__main__":
    key = jax.random.PRNGKey(0)
    k1, k2 = jax.random.split(key)

    # Case 1: module-scale shapes (d_model=32, batch=2, seq=8) -> general path.
    d_model, max_len, seq_len, batch = 32, 64, 8, 2
    x = jax.random.normal(k1, (seq_len, batch, d_model), dtype=jnp.float32)
    pe = _build_pe(max_len, d_model)
    ref = x + pe[:seq_len][:, None, :]          # reference before the aliased call
    y = jax.block_until_ready(positional_encoding_forward(x, pe))
    assert jnp.allclose(y, ref, atol=1e-6), "mismatch vs reference (general path)"

    # Case 2: exercise the lane-dense fold path (d_model % 128 == 0, batch < 8).
    d2, s2, b2 = 128, 16, 2
    x2 = jax.random.normal(k2, (s2, b2, d2), dtype=jnp.float32)
    pe2 = _build_pe(256, d2)
    ref2 = x2 + pe2[:s2][:, None, :]
    y2 = jax.block_until_ready(positional_encoding_forward(x2, pe2))
    assert jnp.allclose(y2, ref2, atol=1e-6), "mismatch vs reference (fold path)"

    print("KERNEL_OK")
</pallas_src>

<mosaic_0001>
module attributes {stable_mosaic.version = 11 : i64} {
  func.func @_pe_add_kernel(%arg0: i32, %arg1: i32, %arg2: memref<8x2x32xf32, #tpu.memory_space<vmem>>, %arg3: memref<8x32xf32, #tpu.memory_space<vmem>>, %arg4: memref<8x2x32xf32, #tpu.memory_space<vmem>>) attributes {dimension_semantics = [#tpu.dimension_semantics<parallel>, #tpu.dimension_semantics<arbitrary>], iteration_bounds = array<i64: 1, 1>, scalar_prefetch = 0 : i64, scratch_operands = 0 : i64, tpu.core_type = #tpu.core_type<tc>, window_params = [{transform_indices = @transform_0, window_bounds = array<i64: 8, 2, 32>}, {transform_indices = @transform_1, window_bounds = array<i64: 8, 32>}, {transform_indices = @transform_2, window_bounds = array<i64: 8, 2, 32>}]} {
    %c0 = arith.constant 0 : index
    %c0_0 = arith.constant 0 : index
    %c0_1 = arith.constant 0 : index
    %0 = vector.load %arg2[%c0, %c0_0, %c0_1] : memref<8x2x32xf32, #tpu.memory_space<vmem>>, vector<8x2x32xf32>
    %c0_2 = arith.constant 0 : index
    %c0_3 = arith.constant 0 : index
    %1 = vector.load %arg3[%c0_2, %c0_3] : memref<8x32xf32, #tpu.memory_space<vmem>>, vector<8x32xf32>
    %2 = vector.shape_cast %1 : vector<8x32xf32> to vector<8x1x32xf32>
    %3 = vector.broadcast %2 : vector<8x1x32xf32> to vector<8x2x32xf32>
    %4 = arith.addf %0, %3 : vector<8x2x32xf32>
    %c0_4 = arith.constant 0 : index
    %c0_5 = arith.constant 0 : index
    %c0_6 = arith.constant 0 : index
    %5 = vector.load %arg4[%c0_4, %c0_5, %c0_6] : memref<8x2x32xf32, #tpu.memory_space<vmem>>, vector<8x2x32xf32>
    tpu.vector_store %arg4[%c0_4, %c0_5, %c0_6], %4 {strides = array<i32>} : memref<8x2x32xf32, #tpu.memory_space<vmem>>, vector<8x2x32xf32>,
    return
  }
  func.func @transform_0(%arg0: i32, %arg1: i32) -> (i32, i32, i32) {
    %c0_i32 = arith.constant 0 : i32
    %c0_i32_0 = arith.constant 0 : i32
    return %arg0, %arg1, %c0_i32 : i32, i32, i32
  }
  func.func @transform_1(%arg0: i32, %arg1: i32) -> (i32, i32) {
    %c0_i32 = arith.constant 0 : i32
    %c0_i32_0 = arith.constant 0 : i32
    return %arg0, %c0_i32 : i32, i32
  }
  func.func @transform_2(%arg0: i32, %arg1: i32) -> (i32, i32, i32) {
    %c0_i32 = arith.constant 0 : i32
    %c0_i32_0 = arith.constant 0 : i32
    return %arg0, %arg1, %c0_i32 : i32, i32, i32
  }
}

</mosaic_0001>

<llo_original>
// kernel: tpu_custom_call.1
$region0: #{tpu_custom_call.1}
  #allocation0 [shape = 'u32[]', space=smem, size = 0x4, offset = 0x4, fixed_abs, tag = 'smem constant byte address 0x4 - core index']
  #allocation1 [shape = 'u32[144,128]{1,0:T(1,128)}', space=vmem, size = 0x12000, scoped, tag = 'internal scratch']
  %s0 = inlined_call_operand.hbm [shape: f32[8,2,32], index: 0, kind: input, shape index: {}, may-alias: {0,2}]
  %s1 = inlined_call_operand.vmem [shape: f32[64,32], index: 1, kind: input, shape index: {}]
  %s2 = inlined_call_operand.hbm [shape: f32[8,2,32], index: 2, kind: output, shape index: {}, may-alias: {0,2}]
  %s3 = sld [smem:[#allocation0]]
  $region22: #{tpu_custom_call.1} parent=0
    _
  %s5 = ssub.s32 1, %s3
  %s6 = scalar_select 0, %s5, %s3
  $region1: #{tpu_custom_call.1} parent=0
    #allocation2 [shape = 'u8[8192]{0}', space=vmem, size = 0x2000, scoped, tag = 'input window, operand 0, single buffered']
    #allocation3 [shape = 's32[1]{0}', space=sflag, size = 0x4, scoped, tag = 'scoped memory for tpu_custom_call.1']
    #allocation4 [shape = 's32[1]{0}', space=sflag, size = 0x4, scoped, tag = 'scoped memory for tpu_custom_call.1']
    #allocation5 [shape = 'u8[8192]{0}', space=vmem, size = 0x2000, scoped, tag = 'output window, operand 0, single buffered']
    %7 = vsyncpa [#allocation3], 0
    %8 = vsyncpa [#allocation4], 0
    // Predicated region
    $region2: #{tpu_custom_call.1} parent=1 // pred_check
      _
    $region3: #{tpu_custom_call.1} parent=1 // pred_check_branch
      %10 = sbr.rel (0) target = $region5
    $region4: #{tpu_custom_call.1} parent=1 // pred_region
      %s12 = ssub.s32 256, 256
      %13 = vsyncadd [#allocation3], %s12
      %s14 = sshll.u32 [#allocation2], 4
      %s15 = int_to_ptr.vmem [resolvable:$true] %s14
      %20 = dma.hbm_to_vmem [thread:$0]  %s0, 256, %s15, [#allocation3], 32, 32, 2
    $region5: #{tpu_custom_call.1} parent=1 // pred_fallthru
      _
    // Predicated region
    $region6: #{tpu_custom_call.1} parent=1 // pred_check
      _
    $region7: #{tpu_custom_call.1} parent=1 // pred_check_branch
      %22 = sbr.rel (0) target = $region9
    $region8: #{tpu_custom_call.1} parent=1 // pred_region
      _
    $region9: #{tpu_custom_call.1} parent=1 // pred_fallthru
      _
    // Predicated region
    $region10: #{tpu_custom_call.1} parent=1 // pred_check
      _
    $region11: #{tpu_custom_call.1} parent=1 // pred_check_branch
      %24 = sbr.rel (0) target = $region13
    $region12: #{tpu_custom_call.1} parent=1 // pred_region
      %25 = dma.done [#allocation3], 256
    $region13: #{tpu_custom_call.1} parent=1 // pred_fallthru
      _
    %v26 = vld [vmem:[#allocation2] sm:$0x3]
    %v27 = vld [vmem:[#allocation2 + $0x2] sm:$0x3]
    %v28 = vld [vmem:[#allocation2 + $0x4] sm:$0x3]
    %v29 = vld [vmem:[#allocation2 + $0x6] sm:$0x3]
    %v30 = vld [vmem:[#allocation2 + $0x8] sm:$0x3]
    %v31 = vld [vmem:[#allocation2 + $0xa] sm:$0x3]
    %v32 = vld [vmem:[#allocation2 + $0xc] sm:$0x3]
    %v33 = vld [vmem:[#allocation2 + $0xe] sm:$0x3]
    %v34 = vld [vmem:[%s1] sm:$0xff]
    %v36 = vcombine.high %v34, %v34
    %v38 = vunpack.c.l.s4 1966171168
    %v39 = vunpack.c.0.s8 %v38
    %v40 = vlaneseq
    %v41 = vshrl.u32 %v40, 7
    %v42 = vsub.s32 %v39, %v41
    %v43 = vrot.slane %v34, %v42
    %v45 = vunpack.c.l.s4 1966171168
    %v46 = vunpack.c.0.s8 %v45
    %v47 = vlaneseq
    %v48 = vshrl.u32 %v47, 7
    %v49 = vsub.s32 %v46, %v48
    %v50 = vrot.slane %v36, %v49
    %v51 = vcombine.high %v43, %v43
    %v52 = vcombine.high %v50, %v50
    %v54 = vunpack.c.l.s4 1966171168
    %v55 = vunpack.c.0.s8 %v54
    %v56 = vlaneseq
    %v57 = vshrl.u32 %v56, 7
    %v58 = vsub.s32 %v55, %v57
    %v59 = vrot.slane %v43, %v58
    %v61 = vunpack.c.l.s4 1966171168
    %v62 = vunpack.c.0.s8 %v61
    %v63 = vlaneseq
    %v64 = vshrl.u32 %v63, 7
    %v65 = vsub.s32 %v62, %v64
    %v66 = vrot.slane %v50, %v65
    %v68 = vunpack.c.l.s4 1966171168
    %v69 = vunpack.c.0.s8 %v68
    %v70 = vlaneseq
    %v71 = vshrl.u32 %v70, 7
    %v72 = vsub.s32 %v69, %v71
    %v73 = vrot.slane %v51, %v72
    %v75 = vunpack.c.l.s4 1966171168
    %v76 = vunpack.c.0.s8 %v75
    %v77 = vlaneseq
    %v78 = vshrl.u32 %v77, 7
    %v79 = vsub.s32 %v76, %v78
    %v80 = vrot.slane %v52, %v79
    %v81 = vcombine.high %v59, %v59
    %v82 = vcombine.high %v66, %v66
    %v83 = vcombine.high %v73, %v73
    %v84 = vcombine.high %v80, %v80
    %v85 = vlaneseq
    %v86 = vshrl.u32 %v85, 7
    %v87 = vsub.s32 0, %v86
    %v88 = vrot.slane %v59, %v87
    %v89 = vlaneseq
    %v90 = vshrl.u32 %v89, 7
    %v91 = vsub.s32 0, %v90
    %v92 = vrot.slane %v73, %v91
    %v93 = vlaneseq
    %v94 = vshrl.u32 %v93, 7
    %v95 = vsub.s32 0, %v94
    %v96 = vrot.slane %v81, %v95
    %v97 = vlaneseq
    %v98 = vshrl.u32 %v97, 7
    %v99 = vsub.s32 0, %v98
    %v100 = vrot.slane %v83, %v99
    %v101 = vlaneseq
    %v102 = vshrl.u32 %v101, 7
    %v103 = vsub.s32 0, %v102
    %v104 = vrot.slane %v66, %v103
    %v105 = vlaneseq
    %v106 = vshrl.u32 %v105, 7
    %v107 = vsub.s32 0, %v106
    %v108 = vrot.slane %v80, %v107
    %v109 = vlaneseq
    %v110 = vshrl.u32 %v109, 7
    %v111 = vsub.s32 0, %v110
    %v112 = vrot.slane %v82, %v111
    %v113 = vlaneseq
    %v114 = vshrl.u32 %v113, 7
    %v115 = vsub.s32 0, %v114
    %v116 = vrot.slane %v84, %v115
    %v125 = vadd.f32 %v26, %v88
    %v126 = vadd.f32 %v27, %v92
    %v127 = vadd.f32 %v28, %v96
    %v128 = vadd.f32 %v29, %v100
    %v129 = vadd.f32 %v30, %v104
    %v130 = vadd.f32 %v31, %v108
    %v131 = vadd.f32 %v32, %v112
    %v132 = vadd.f32 %v33, %v116
    %vm133 = vcmask 254976
    %134 = vst.msk [vmem:[#allocation5] sm:$0x3] %vm133, %v125
    %135 = vst.msk [vmem:[#allocation5 + $0x2] sm:$0x3] %vm133, %v126
    %136 = vst.msk [vmem:[#allocation5 + $0x4] sm:$0x3] %vm133, %v127
    %137 = vst.msk [vmem:[#allocation5 + $0x6] sm:$0x3] %vm133, %v128
    %138 = vst.msk [vmem:[#allocation5 + $0x8] sm:$0x3] %vm133, %v129
    %139 = vst.msk [vmem:[#allocation5 + $0xa] sm:$0x3] %vm133, %v130
    %140 = vst.msk [vmem:[#allocation5 + $0xc] sm:$0x3] %vm133, %v131
    %141 = vst.msk [vmem:[#allocation5 + $0xe] sm:$0x3] %vm133, %v132
    // Predicated region
    $region14: #{tpu_custom_call.1} parent=1 // pred_check
      _
    $region15: #{tpu_custom_call.1} parent=1 // pred_check_branch
      %143 = sbr.rel (0) target = $region17
    $region16: #{tpu_custom_call.1} parent=1 // pred_region
      %s145 = ssub.s32 256, 256
      %146 = vsyncadd [#allocation4], %s145
      %s147 = sshll.u32 [#allocation5], 4
      %s148 = int_to_ptr.vmem [resolvable:$true] %s147
      %153 = dma.vmem_to_hbm [thread:$0]  %s148, 256, %s2, [#allocation4], 32, 32, 2
    $region17: #{tpu_custom_call.1} parent=1 // pred_fallthru
      _
    // Predicated region
    $region18: #{tpu_custom_call.1} parent=1 // pred_check
      _
    $region19: #{tpu_custom_call.1} parent=1 // pred_check_branch
      %155 = sbr.rel (0) target = $region21
    $region20: #{tpu_custom_call.1} parent=1 // pred_region
      %156 = dma.done [#allocation4], 256
    $region21: #{tpu_custom_call.1} parent=1 // pred_fallthru
      _
    %157 = vsyncpa [#allocation3], 1
    %158 = vsyncpa [#allocation4], 1

</llo_original>
